<compile_context>
chip_gen: v7x
topology: tpu7x:2x2x1
jax: 0.10.0
libtpu: 0.0.40
codegen_flags: <defaults>
</compile_context>

<pallas_src>
import functools

import jax
import jax.numpy as jnp
from jax import lax
from jax.experimental import pallas as pl
from jax.experimental.pallas import tpu as pltpu


# ----------------------------- norm helper -----------------------------

def _channel_mix(sq, weight, unroll_c):
    """norm_like[i, p] = sum_j weight[i, j] * sq[j, p]  with sq:(C,T), weight:(C,C)."""
    C = weight.shape[0]
    if unroll_c:
        acc = None
        for j in range(C):
            term = weight[:, j:j + 1] * sq[j:j + 1, :]        # (C,1)*(1,T) -> (C,T), VPU
            acc = term if acc is None else acc + term
        return acc
    return jnp.dot(weight, sq, preferred_element_type=jnp.float32)


# ----------------------------- Pallas kernels -----------------------------

def _stats_kernel(x_ref, gamma_ref, beta_ref,
                  s2_ref, suma_ref, sumx_ref, *,
                  inverse: bool, hw: int, tile_hw: int, unroll_c: bool):
    """Per-image partials: max(sqrt(norm)), sum(x op sqrt(norm)), sum(x) over pixels."""
    t = pl.program_id(1)

    @pl.when(t == 0)
    def _init():
        s2_ref[...] = jnp.zeros_like(s2_ref)      # norm = beta + gamma.x^2 > 0 => safe -inf
        suma_ref[...] = jnp.zeros_like(suma_ref)
        sumx_ref[...] = jnp.zeros_like(sumx_ref)

    x = x_ref[...]                                 # (C, T)  pixels on lanes
    sq = x * x
    norm = _channel_mix(sq, gamma_ref[...], unroll_c) + beta_ref[...]
    sqrt_norm = jnp.sqrt(norm)
    if inverse:
        a = x * sqrt_norm
    else:
        a = x * lax.rsqrt(norm)                    # EUP rsqrt instead of VALU divide

    if hw % tile_hw != 0:                          # mask the padded tail block (static check)
        lane = lax.broadcasted_iota(jnp.int32, x.shape, dimension=1)
        valid = (t * tile_hw + lane) < hw
        sqrt_norm = jnp.where(valid, sqrt_norm, 0.0)
        a = jnp.where(valid, a, 0.0)
        x = jnp.where(valid, x, 0.0)

    s2_ref[...] = jnp.maximum(s2_ref[...], jnp.max(sqrt_norm, axis=1, keepdims=True))
    suma_ref[...] += jnp.sum(a, axis=1, keepdims=True)
    sumx_ref[...] += jnp.sum(x, axis=1, keepdims=True)


def _out_kernel(x_ref, g3_ref, coef_ref, o_ref, *, unroll_c: bool):
    """out = a * x + b + (s3*gamma) @ x^2   with a = s1/s2 (or s1*s2), b = offset + s3*beta."""
    x = x_ref[...]                                 # (C, T)
    sq = x * x
    mix = _channel_mix(sq, g3_ref[...], unroll_c)
    a = coef_ref[:, 0:1]
    b = coef_ref[:, 1:2]
    o_ref[...] = a * x + b + mix


# ----------------------------- Wrapper -----------------------------

def gdn_v3_forward(x_nchw, gamma, beta, s1, s3, *, inverse=False, tile_hw=2048):
    N, C, H, W = x_nchw.shape
    HW = H * W
    P = N * HW

    x = x_nchw.reshape(N, C, HW).astype(jnp.float32)   # free view, no transpose
    gamma = gamma.astype(jnp.float32)                   # (C, C)
    beta_c = beta.reshape(C, 1).astype(jnp.float32)
    s1_c = s1.reshape(C, 1).astype(jnp.float32)
    s3_c = s3.reshape(C, 1).astype(jnp.float32)

    # --- tile sizing: lane-dense, large, but VMEM-bounded (v7x has only 64 MiB) ---
    max_tile_for_vmem = max(128, (4 * 1024 * 1024) // (4 * C))   # <= ~4 MiB per block
    tile_hw = min(tile_hw, max_tile_for_vmem)
    if tile_hw >= HW:
        tile_hw = HW                                   # full-dim block (always legal)
    else:
        tile_hw = max(128, (tile_hw // 128) * 128)     # lane dim multiple of 128

    num_t = pl.cdiv(HW, tile_hw)
    grid = (N, num_t)
    unroll_c = C <= 32                                 # tiny C: skip the MXU entirely

    x_spec = pl.BlockSpec((None, C, tile_hw), lambda n, t: (n, 0, t))
    stat_spec = pl.BlockSpec((None, C, 1), lambda n, t: (n, 0, 0))
    mat_spec = pl.BlockSpec((C, C), lambda n, t: (0, 0))
    col_spec = pl.BlockSpec((C, 1), lambda n, t: (0, 0))
    coef_spec = pl.BlockSpec((C, 2), lambda n, t: (0, 0))

    vmem_limit = 48 * 1024 * 1024
    norm_flops = 2 * P * C * C

    # ---- pass 1: per-image partial reductions (max / sums), combined below ----
    stats_call = pl.pallas_call(
        functools.partial(_stats_kernel, inverse=inverse, hw=HW,
                          tile_hw=tile_hw, unroll_c=unroll_c),
        out_shape=(jax.ShapeDtypeStruct((N, C, 1), jnp.float32),
                   jax.ShapeDtypeStruct((N, C, 1), jnp.float32),
                   jax.ShapeDtypeStruct((N, C, 1), jnp.float32)),
        grid_spec=pltpu.PrefetchScalarGridSpec(
            num_scalar_prefetch=0,
            grid=grid,
            in_specs=[x_spec, mat_spec, col_spec],
            out_specs=(stat_spec, stat_spec, stat_spec),
        ),
        compiler_params=pltpu.CompilerParams(
            dimension_semantics=("parallel", "arbitrary"),
            vmem_limit_bytes=vmem_limit),
        cost_estimate=pl.CostEstimate(
            flops=norm_flops + 6 * P * C,
            transcendentals=2 * P * C,
            bytes_accessed=4 * P * C + 12 * N * C),
    )
    s2_p, suma_p, sumx_p = stats_call(x, gamma, beta_c)

    s2 = jnp.max(s2_p, axis=0)       # (C, 1)
    suma = jnp.sum(suma_p, axis=0)   # (C, 1)
    sumx = jnp.sum(sumx_p, axis=0)   # (C, 1)

    # offset = mean(x op sqrt(norm) - x op s2) over all pixels (per channel)
    if inverse:
        offset = (suma - sumx * s2) / P
        a_coef = s1_c * s2
    else:
        offset = (suma - sumx / s2) / P
        a_coef = s1_c / s2
    b_coef = offset + s3_c * beta_c            # folds beta into the constant term
    g3 = s3_c * gamma                          # g3[i, j] = s3[i] * gamma[i, j]
    coef = jnp.concatenate([a_coef, b_coef], axis=1)   # (C, 2) packed row operands

    # ---- pass 2: final elementwise output (fully parallel) ----
    out_call = pl.pallas_call(
        functools.partial(_out_kernel, unroll_c=unroll_c),
        out_shape=jax.ShapeDtypeStruct((N, C, HW), jnp.float32),
        grid_spec=pltpu.PrefetchScalarGridSpec(
            num_scalar_prefetch=0,
            grid=grid,
            in_specs=[x_spec, mat_spec, coef_spec],
            out_specs=x_spec,
        ),
        compiler_params=pltpu.CompilerParams(
            dimension_semantics=("parallel", "parallel"),
            vmem_limit_bytes=vmem_limit),
        cost_estimate=pl.CostEstimate(
            flops=norm_flops + 4 * P * C,
            transcendentals=0,
            bytes_accessed=2 * 4 * P * C),
    )
    out = out_call(x, g3, coef)

    return out.reshape(N, C, H, W)


# ----------------------------- Parameter setup (deterministic) -----------------------------

def make_gdn_v3_params(C, beta_min=1e-6, gamma_init=0.1):
    """Replicates GDN.__init__ + NonNegativeParametrizer reparametrization."""
    reparam_offset = 2.0 ** -18
    pedestal = reparam_offset ** 2

    # beta: init = sqrt(max(1 + ped, ped)); forward = max(., bound)^2 - ped
    beta_bound = (beta_min + pedestal) ** 0.5
    beta_param = jnp.sqrt(jnp.maximum(jnp.ones((C,), jnp.float32) + pedestal, pedestal))
    beta = jnp.maximum(beta_param, beta_bound) ** 2 - pedestal

    # gamma: init = sqrt(max(0.1*I + ped, ped)); forward = max(., bound)^2 - ped
    gamma_bound = pedestal ** 0.5
    gamma_param = jnp.sqrt(jnp.maximum(gamma_init * jnp.eye(C, dtype=jnp.float32) + pedestal,
                                       pedestal))
    gamma = jnp.maximum(gamma_param, gamma_bound) ** 2 - pedestal

    s1 = jnp.ones((C,), jnp.float32)      # nn.Parameter(torch.ones_like(beta))
    s3 = jnp.zeros((C,), jnp.float32)     # nn.Parameter(torch.zeros_like(beta))
    return gamma, beta, s1, s3


# ----------------------------- Pure-JAX reference (for verification) -----------------------------

def _ref_forward(x, gamma, beta, s1, s3, inverse=False):
    N, C, H, W = x.shape
    sq = x ** 2
    norm = jnp.einsum('ncxy,kc->nkxy', sq, gamma) + beta.reshape(1, C, 1, 1)
    sqrtn = jnp.sqrt(norm)
    s2 = jnp.max(sqrtn, axis=(0, 2, 3)).reshape(1, C, 1, 1)
    s1r = s1.reshape(1, C, 1, 1)
    s3r = s3.reshape(1, C, 1, 1)
    if inverse:
        offset = jnp.mean(x * sqrtn - x * s2, axis=(0, 2, 3)).reshape(1, C, 1, 1)
        return s1r * x * s2 + offset + s3r * norm
    else:
        offset = jnp.mean(x / sqrtn - x / s2, axis=(0, 2, 3)).reshape(1, C, 1, 1)
        return s1r * x / s2 + offset + s3r * norm


# ----------------------------- Main -----------------------------

if __name__ == "__main__":
    key = jax.random.PRNGKey(0)
    N, C, H, W = 2, 4, 16, 16
    x = jax.random.normal(key, (N, C, H, W), dtype=jnp.float32)

    gamma, beta, s1, s3 = make_gdn_v3_params(C)

    out = gdn_v3_forward(x, gamma, beta, s1, s3, inverse=False)
    out = jax.block_until_ready(out)

    ref = _ref_forward(x, gamma, beta, s1, s3, inverse=False)
    assert out.shape == (N, C, H, W)
    assert jnp.allclose(out, ref, atol=2e-5, rtol=2e-5), "Pallas output mismatch vs JAX reference"

    print("KERNEL_OK")
</pallas_src>

<mosaic_0001>
module attributes {stable_mosaic.version = 11 : i64} {
  func.func @_stats_kernel(%arg0: i32, %arg1: i32, %arg2: memref<1x4x256xf32, #tpu.memory_space<vmem>>, %arg3: memref<4x4xf32, #tpu.memory_space<vmem>>, %arg4: memref<4x1xf32, #tpu.memory_space<vmem>>, %arg5: memref<1x4x1xf32, #tpu.memory_space<vmem>>, %arg6: memref<1x4x1xf32, #tpu.memory_space<vmem>>, %arg7: memref<1x4x1xf32, #tpu.memory_space<vmem>>) attributes {dimension_semantics = [#tpu.dimension_semantics<parallel>, #tpu.dimension_semantics<arbitrary>], iteration_bounds = array<i64: 2, 1>, scalar_prefetch = 0 : i64, scratch_operands = 0 : i64, tpu.core_type = #tpu.core_type<tc>, window_params = [{transform_indices = @transform_0, window_bounds = array<i64: 1, 4, 256>}, {pipeline_mode = #tpu.pipeline_mode<synchronous>, transform_indices = @transform_1, window_bounds = array<i64: 4, 4>}, {pipeline_mode = #tpu.pipeline_mode<synchronous>, transform_indices = @transform_2, window_bounds = array<i64: 4, 1>}, {transform_indices = @transform_3, window_bounds = array<i64: 1, 4, 1>}, {transform_indices = @transform_4, window_bounds = array<i64: 1, 4, 1>}, {transform_indices = @transform_5, window_bounds = array<i64: 1, 4, 1>}]} {
    %c0_i32 = arith.constant 0 : i32
    %0 = arith.cmpi eq, %arg1, %c0_i32 : i32
    %1 = arith.extui %0 : i1 to i32
    %c0_i32_0 = arith.constant 0 : i32
    %2 = arith.cmpi ne, %1, %c0_i32_0 : i32
    scf.if %2 {
      %cst_27 = arith.constant 0.000000e+00 : f32
      %60 = vector.broadcast %cst_27 : f32 to vector<4x1xf32>
      %c0_28 = arith.constant 0 : index
      %c0_29 = arith.constant 0 : index
      %c0_30 = arith.constant 0 : index
      %61 = vector.load %arg5[%c0_28, %c0_29, %c0_30] : memref<1x4x1xf32, #tpu.memory_space<vmem>>, vector<1x4x1xf32>
      %62 = vector.shape_cast %61 : vector<1x4x1xf32> to vector<4x1xf32>
      %63 = vector.shape_cast %60 : vector<4x1xf32> to vector<1x4x1xf32>
      tpu.vector_store %arg5[%c0_28, %c0_29, %c0_30], %63 {strides = array<i32>} : memref<1x4x1xf32, #tpu.memory_space<vmem>>, vector<1x4x1xf32>,
      %cst_31 = arith.constant 0.000000e+00 : f32
      %64 = vector.broadcast %cst_31 : f32 to vector<4x1xf32>
      %c0_32 = arith.constant 0 : index
      %c0_33 = arith.constant 0 : index
      %c0_34 = arith.constant 0 : index
      %65 = vector.load %arg6[%c0_32, %c0_33, %c0_34] : memref<1x4x1xf32, #tpu.memory_space<vmem>>, vector<1x4x1xf32>
      %66 = vector.shape_cast %65 : vector<1x4x1xf32> to vector<4x1xf32>
      %67 = vector.shape_cast %64 : vector<4x1xf32> to vector<1x4x1xf32>
      tpu.vector_store %arg6[%c0_32, %c0_33, %c0_34], %67 {strides = array<i32>} : memref<1x4x1xf32, #tpu.memory_space<vmem>>, vector<1x4x1xf32>,
      %cst_35 = arith.constant 0.000000e+00 : f32
      %68 = vector.broadcast %cst_35 : f32 to vector<4x1xf32>
      %c0_36 = arith.constant 0 : index
      %c0_37 = arith.constant 0 : index
      %c0_38 = arith.constant 0 : index
      %69 = vector.load %arg7[%c0_36, %c0_37, %c0_38] : memref<1x4x1xf32, #tpu.memory_space<vmem>>, vector<1x4x1xf32>
      %70 = vector.shape_cast %69 : vector<1x4x1xf32> to vector<4x1xf32>
      %71 = vector.shape_cast %68 : vector<4x1xf32> to vector<1x4x1xf32>
      tpu.vector_store %arg7[%c0_36, %c0_37, %c0_38], %71 {strides = array<i32>} : memref<1x4x1xf32, #tpu.memory_space<vmem>>, vector<1x4x1xf32>,
    } else {
    }
    %c0 = arith.constant 0 : index
    %c0_1 = arith.constant 0 : index
    %c0_2 = arith.constant 0 : index
    %3 = vector.load %arg2[%c0, %c0_1, %c0_2] : memref<1x4x256xf32, #tpu.memory_space<vmem>>, vector<1x4x256xf32>
    %4 = vector.shape_cast %3 : vector<1x4x256xf32> to vector<4x256xf32>
    %5 = arith.mulf %4, %4 : vector<4x256xf32>
    %c0_3 = arith.constant 0 : index
    %c0_4 = arith.constant 0 : index
    %6 = vector.load %arg3[%c0_3, %c0_4] : memref<4x4xf32, #tpu.memory_space<vmem>>, vector<4x4xf32>
    %7 = vector.extract_strided_slice %6 {offsets = [0, 0], sizes = [4, 1], strides = [1, 1]} : vector<4x4xf32> to vector<4x1xf32>
    %8 = vector.extract_strided_slice %5 {offsets = [0, 0], sizes = [1, 256], strides = [1, 1]} : vector<4x256xf32> to vector<1x256xf32>
    %9 = vector.broadcast %7 : vector<4x1xf32> to vector<4x256xf32>
    %10 = vector.broadcast %8 : vector<1x256xf32> to vector<4x256xf32>
    %11 = arith.mulf %9, %10 : vector<4x256xf32>
    %12 = vector.extract_strided_slice %6 {offsets = [0, 1], sizes = [4, 1], strides = [1, 1]} : vector<4x4xf32> to vector<4x1xf32>
    %13 = vector.extract_strided_slice %5 {offsets = [1, 0], sizes = [1, 256], strides = [1, 1]} : vector<4x256xf32> to vector<1x256xf32>
    %14 = vector.broadcast %12 : vector<4x1xf32> to vector<4x256xf32>
    %15 = vector.broadcast %13 : vector<1x256xf32> to vector<4x256xf32>
    %16 = arith.mulf %14, %15 : vector<4x256xf32>
    %17 = arith.addf %11, %16 : vector<4x256xf32>
    %18 = vector.extract_strided_slice %6 {offsets = [0, 2], sizes = [4, 1], strides = [1, 1]} : vector<4x4xf32> to vector<4x1xf32>
    %19 = vector.extract_strided_slice %5 {offsets = [2, 0], sizes = [1, 256], strides = [1, 1]} : vector<4x256xf32> to vector<1x256xf32>
    %20 = vector.broadcast %18 : vector<4x1xf32> to vector<4x256xf32>
    %21 = vector.broadcast %19 : vector<1x256xf32> to vector<4x256xf32>
    %22 = arith.mulf %20, %21 : vector<4x256xf32>
    %23 = arith.addf %17, %22 : vector<4x256xf32>
    %24 = vector.extract_strided_slice %6 {offsets = [0, 3], sizes = [4, 1], strides = [1, 1]} : vector<4x4xf32> to vector<4x1xf32>
    %25 = vector.extract_strided_slice %5 {offsets = [3, 0], sizes = [1, 256], strides = [1, 1]} : vector<4x256xf32> to vector<1x256xf32>
    %26 = vector.broadcast %24 : vector<4x1xf32> to vector<4x256xf32>
    %27 = vector.broadcast %25 : vector<1x256xf32> to vector<4x256xf32>
    %28 = arith.mulf %26, %27 : vector<4x256xf32>
    %29 = arith.addf %23, %28 : vector<4x256xf32>
    %c0_5 = arith.constant 0 : index
    %c0_6 = arith.constant 0 : index
    %30 = vector.load %arg4[%c0_5, %c0_6] : memref<4x1xf32, #tpu.memory_space<vmem>>, vector<4x1xf32>
    %31 = vector.broadcast %30 : vector<4x1xf32> to vector<4x256xf32>
    %32 = arith.addf %29, %31 : vector<4x256xf32>
    %33 = math.sqrt %32 : vector<4x256xf32>
    %34 = math.rsqrt %32 : vector<4x256xf32>
    %35 = arith.mulf %4, %34 : vector<4x256xf32>
    %c0_7 = arith.constant 0 : index
    %c0_8 = arith.constant 0 : index
    %c0_9 = arith.constant 0 : index
    %36 = vector.load %arg5[%c0_7, %c0_8, %c0_9] : memref<1x4x1xf32, #tpu.memory_space<vmem>>, vector<1x4x1xf32>
    %37 = vector.shape_cast %36 : vector<1x4x1xf32> to vector<4x1xf32>
    %cst = arith.constant dense<0xFF800000> : vector<4xf32>
    %38 = vector.multi_reduction <maximumf>, %33, %cst [1] : vector<4x256xf32> to vector<4xf32>
    %39 = vector.shape_cast %38 : vector<4xf32> to vector<4x1xf32>
    %40 = arith.maximumf %37, %39 : vector<4x1xf32>
    %c0_10 = arith.constant 0 : index
    %c0_11 = arith.constant 0 : index
    %c0_12 = arith.constant 0 : index
    %41 = vector.load %arg5[%c0_10, %c0_11, %c0_12] : memref<1x4x1xf32, #tpu.memory_space<vmem>>, vector<1x4x1xf32>
    %42 = vector.shape_cast %41 : vector<1x4x1xf32> to vector<4x1xf32>
    %43 = vector.shape_cast %40 : vector<4x1xf32> to vector<1x4x1xf32>
    tpu.vector_store %arg5[%c0_10, %c0_11, %c0_12], %43 {strides = array<i32>} : memref<1x4x1xf32, #tpu.memory_space<vmem>>, vector<1x4x1xf32>,
    %c0_13 = arith.constant 0 : index
    %c0_14 = arith.constant 0 : index
    %c0_15 = arith.constant 0 : index
    %44 = vector.load %arg6[%c0_13, %c0_14, %c0_15] : memref<1x4x1xf32, #tpu.memory_space<vmem>>, vector<1x4x1xf32>
    %45 = vector.shape_cast %44 : vector<1x4x1xf32> to vector<4x1xf32>
    %cst_16 = arith.constant dense<0.000000e+00> : vector<4xf32>
    %46 = vector.multi_reduction <add>, %35, %cst_16 [1] : vector<4x256xf32> to vector<4xf32>
    %47 = vector.shape_cast %46 : vector<4xf32> to vector<4x1xf32>
    %48 = arith.addf %45, %47 : vector<4x1xf32>
    %c0_17 = arith.constant 0 : index
    %c0_18 = arith.constant 0 : index
    %c0_19 = arith.constant 0 : index
    %49 = vector.load %arg6[%c0_17, %c0_18, %c0_19] : memref<1x4x1xf32, #tpu.memory_space<vmem>>, vector<1x4x1xf32>
    %50 = vector.shape_cast %49 : vector<1x4x1xf32> to vector<4x1xf32>
    %51 = vector.shape_cast %48 : vector<4x1xf32> to vector<1x4x1xf32>
    tpu.vector_store %arg6[%c0_17, %c0_18, %c0_19], %51 {strides = array<i32>} : memref<1x4x1xf32, #tpu.memory_space<vmem>>, vector<1x4x1xf32>,
    %c0_20 = arith.constant 0 : index
    %c0_21 = arith.constant 0 : index
    %c0_22 = arith.constant 0 : index
    %52 = vector.load %arg7[%c0_20, %c0_21, %c0_22] : memref<1x4x1xf32, #tpu.memory_space<vmem>>, vector<1x4x1xf32>
    %53 = vector.shape_cast %52 : vector<1x4x1xf32> to vector<4x1xf32>
    %cst_23 = arith.constant dense<0.000000e+00> : vector<4xf32>
    %54 = vector.multi_reduction <add>, %4, %cst_23 [1] : vector<4x256xf32> to vector<4xf32>
    %55 = vector.shape_cast %54 : vector<4xf32> to vector<4x1xf32>
    %56 = arith.addf %53, %55 : vector<4x1xf32>
    %c0_24 = arith.constant 0 : index
    %c0_25 = arith.constant 0 : index
    %c0_26 = arith.constant 0 : index
    %57 = vector.load %arg7[%c0_24, %c0_25, %c0_26] : memref<1x4x1xf32, #tpu.memory_space<vmem>>, vector<1x4x1xf32>
    %58 = vector.shape_cast %57 : vector<1x4x1xf32> to vector<4x1xf32>
    %59 = vector.shape_cast %56 : vector<4x1xf32> to vector<1x4x1xf32>
    tpu.vector_store %arg7[%c0_24, %c0_25, %c0_26], %59 {strides = array<i32>} : memref<1x4x1xf32, #tpu.memory_space<vmem>>, vector<1x4x1xf32>,
    return
  }
  func.func @transform_0(%arg0: i32, %arg1: i32) -> (i32, i32, i32) {
    %c0_i32 = arith.constant 0 : i32
    %c0_i32_0 = arith.constant 0 : i32
    return %arg0, %c0_i32, %arg1 : i32, i32, i32
  }
  func.func @transform_1(%arg0: i32, %arg1: i32) -> (i32, i32) {
    %c0_i32 = arith.constant 0 : i32
    %c0_i32_0 = arith.constant 0 : i32
    %c0_i32_1 = arith.constant 0 : i32
    return %c0_i32, %c0_i32_0 : i32, i32
  }
  func.func @transform_2(%arg0: i32, %arg1: i32) -> (i32, i32) {
    %c0_i32 = arith.constant 0 : i32
    %c0_i32_0 = arith.constant 0 : i32
    %c0_i32_1 = arith.constant 0 : i32
    return %c0_i32, %c0_i32_0 : i32, i32
  }
  func.func @transform_3(%arg0: i32, %arg1: i32) -> (i32, i32, i32) {
    %c0_i32 = arith.constant 0 : i32
    %c0_i32_0 = arith.constant 0 : i32
    %c0_i32_1 = arith.constant 0 : i32
    return %arg0, %c0_i32, %c0_i32_0 : i32, i32, i32
  }
  func.func @transform_4(%arg0: i32, %arg1: i32) -> (i32, i32, i32) {
    %c0_i32 = arith.constant 0 : i32
    %c0_i32_0 = arith.constant 0 : i32
    %c0_i32_1 = arith.constant 0 : i32
    return %arg0, %c0_i32, %c0_i32_0 : i32, i32, i32
  }
  func.func @transform_5(%arg0: i32, %arg1: i32) -> (i32, i32, i32) {
    %c0_i32 = arith.constant 0 : i32
    %c0_i32_0 = arith.constant 0 : i32
    %c0_i32_1 = arith.constant 0 : i32
    return %arg0, %c0_i32, %c0_i32_0 : i32, i32, i32
  }
}

</mosaic_0001>

<llo_original>
// kernel: tpu_custom_call.1
$region0: #{tpu_custom_call.1}
  #allocation0 [shape = 'u32[]', space=smem, size = 0x4, offset = 0x4, fixed_abs, tag = 'smem constant byte address 0x4 - core index']
  #allocation1 [shape = 'u32[144,128]{1,0:T(1,128)}', space=vmem, size = 0x12000, scoped, tag = 'internal scratch']
  %s0 = inlined_call_operand.hbm [shape: f32[2,4,256], index: 0, kind: input, shape index: {}]
  %s1 = inlined_call_operand.vmem [shape: f32[4,4], index: 1, kind: input, shape index: {}]
  %s2 = inlined_call_operand.vmem [shape: f32[4,1], index: 2, kind: input, shape index: {}]
  %s3 = inlined_call_operand.vmem [shape: f32[2,4,1], index: 3, kind: output, shape index: {0}]
  %s4 = inlined_call_operand.vmem [shape: f32[2,4,1], index: 4, kind: output, shape index: {1}]
  %s5 = inlined_call_operand.vmem [shape: f32[2,4,1], index: 5, kind: output, shape index: {2}]
  %6 = xla_tuple %s3, %s4, %s5
  %s7 = sld [smem:[#allocation0]]
  $region69: #{tpu_custom_call.1} parent=0
    _
  %s9 = ssub.s32 1, %s7
  %s10 = scalar_select 0, %s9, %s7
  $region1: #{tpu_custom_call.1} parent=0
    #allocation2 [shape = 'u8[8192]{0}', space=vmem, size = 0x2000, scoped, tag = 'input window, operand 0']
    #allocation3 [shape = 's32[2]{0}', space=sflag, size = 0x8, scoped, tag = 'scoped memory for tpu_custom_call.1']
    %11 = vsyncpa [#allocation3], 0
    %s12 = scalar_lea.sflag [#allocation3], 1
    %13 = vsyncpa %s12, 0
    loop: start=0, step=1, limit=4
    $region2: #{tpu_custom_call.1} parent=1 // loop_pre_header
      _
    $region3: #{tpu_custom_call.1} parent=1 // loop_header
      %s15 = sphi 0, %s19
      %p16 = scmp.ge.s32.totalorder %s15, 4
      %s22 = sphi 0, %s34
      %s23 = sphi 0, %s30
      %s24 = sphi 0, %s22
      %s25 = sphi 0, %s23
      %s26 = sphi 0, %s24
      %s27 = sphi 0, %s25
      %s39 = sphi 0, %s41
      %s42 = sphi 0, %s39
      %s43 = sphi 0, %s42
      %s59 = sphi 0, %s43
      %s63 = sphi 0, %s63
      %s65 = sphi 0, %s63
      %s66 = sphi 0, %s65
      %s80 = sphi 0, %s66
      %s84 = sphi 0, %s84
      %s86 = sphi 0, %s84
      %s87 = sphi 0, %s86
      %s101 = sphi 0, %s87
      %s107 = sphi 0, %s109
      %s110 = sphi 0, %s107
      %s111 = sphi 0, %s110
      %s127 = sphi 0, %s111
      %s133 = sphi 0, %s135
      %s136 = sphi 0, %s133
      %s137 = sphi 0, %s136
      %s153 = sphi 0, %s137
      %s159 = sphi 0, %s161
      %s162 = sphi 0, %s159
      %s163 = sphi 0, %s162
      %s179 = sphi 0, %s163
    $region4: #{tpu_custom_call.1} parent=1 // loop_header_branch
      %18 = sbr.rel (%p16) target = $region8
    $region5: #{tpu_custom_call.1} parent=1 // loop_body
      %s20 = ssub.s32 %s15, 1
      %s21 = ssub.s32 %s15, 2
      %s28 = sadd.s32 1, %s23
      %p29 = scmp.ge.s32.totalorder %s28, 1
      %s30 = scalar_select %p29, 0, %s28
      %s31 = sadd.s32 1, %s22
      %s32 = scalar_select %p29, %s31, %s22
      %p33 = scmp.ge.s32.totalorder %s32, 2
      %s34 = scalar_select %p33, 0, %s32
      %s35 = ssub.s32 %s22, %s34
      %s36 = ssub.s32 %s23, %s30
      %s37 = sor.u32 %s35, %s36
      %p38 = scmp.eq.s32.totalorder %s37, 0
      %s40 = sadd.s32 %s39, 1
      %s41 = scalar_select %p38, %s39, %s40
      %p44 = pneg %p38
      %p45 = scmp.eq.s32.totalorder %s15, 1
      %p46 = por %p44, %p45
      %p47 = scmp.ne.s32.totalorder %s39, %s42
      %p48 = scmp.eq.s32.totalorder %s15, 0
      %p49 = por %p47, %p48
      %p50 = scmp.ne.s32.totalorder %s39, %s42
      %p51 = scmp.eq.s32.totalorder %s20, 1
      %p52 = por %p50, %p51
      %p53 = scmp.ne.s32.totalorder %s42, %s43
      %p54 = scmp.eq.s32.totalorder %s20, 0
      %p55 = por %p53, %p54
      %p56 = scmp.ne.s32.totalorder %s42, %s43
      %p57 = scmp.eq.s32.totalorder %s21, 1
      %p58 = por %p56, %p57
      %p60 = scmp.ne.s32.totalorder %s43, %s59
      %p61 = scmp.eq.s32.totalorder %s21, 0
      %p62 = por %p60, %p61
      %s64 = sadd.s32 %s63, 1
      %p67 = scmp.eq.s32.totalorder %s15, 1
      %p68 = scmp.ne.s32.totalorder %s63, %s65
      %p69 = scmp.eq.s32.totalorder %s15, 0
      %p70 = por %p68, %p69
      %p71 = scmp.ne.s32.totalorder %s63, %s65
      %p72 = scmp.eq.s32.totalorder %s20, 1
      %p73 = por %p71, %p72
      %p74 = scmp.ne.s32.totalorder %s65, %s66
      %p75 = scmp.eq.s32.totalorder %s20, 0
      %p76 = por %p74, %p75
      %p77 = scmp.ne.s32.totalorder %s65, %s66
      %p78 = scmp.eq.s32.totalorder %s21, 1
      %p79 = por %p77, %p78
      %p81 = scmp.ne.s32.totalorder %s66, %s80
      %p82 = scmp.eq.s32.totalorder %s21, 0
      %p83 = por %p81, %p82
      %s85 = sadd.s32 %s84, 1
      %p88 = scmp.eq.s32.totalorder %s15, 1
      %p89 = scmp.ne.s32.totalorder %s84, %s86
      %p90 = scmp.eq.s32.totalorder %s15, 0
      %p91 = por %p89, %p90
      %p92 = scmp.ne.s32.totalorder %s84, %s86
      %p93 = scmp.eq.s32.totalorder %s20, 1
      %p94 = por %p92, %p93
      %p95 = scmp.ne.s32.totalorder %s86, %s87
      %p96 = scmp.eq.s32.totalorder %s20, 0
      %p97 = por %p95, %p96
      %p98 = scmp.ne.s32.totalorder %s86, %s87
      %p99 = scmp.eq.s32.totalorder %s21, 1
      %p100 = por %p98, %p99
      %p102 = scmp.ne.s32.totalorder %s87, %s101
      %p103 = scmp.eq.s32.totalorder %s21, 0
      %p104 = por %p102, %p103
      %s105 = ssub.s32 %s22, %s34
      %p106 = scmp.eq.s32.totalorder %s105, 0
      %s108 = sadd.s32 %s107, 1
      %s109 = scalar_select %p106, %s107, %s108
      %p112 = pneg %p106
      %p113 = scmp.eq.s32.totalorder %s15, 1
      %p114 = por %p112, %p113
      %p115 = scmp.ne.s32.totalorder %s107, %s110
      %p116 = scmp.eq.s32.totalorder %s15, 0
      %p117 = por %p115, %p116
      %p118 = scmp.ne.s32.totalorder %s107, %s110
      %p119 = scmp.eq.s32.totalorder %s20, 1
      %p120 = por %p118, %p119
      %p121 = scmp.ne.s32.totalorder %s110, %s111
      %p122 = scmp.eq.s32.totalorder %s20, 0
      %p123 = por %p121, %p122
      %p124 = scmp.ne.s32.totalorder %s110, %s111
      %p125 = scmp.eq.s32.totalorder %s21, 1
      %p126 = por %p124, %p125
      %p128 = scmp.ne.s32.totalorder %s111, %s127
      %p129 = scmp.eq.s32.totalorder %s21, 0
      %p130 = por %p128, %p129
      %s131 = ssub.s32 %s22, %s34
      %p132 = scmp.eq.s32.totalorder %s131, 0
      %s134 = sadd.s32 %s133, 1
      %s135 = scalar_select %p132, %s133, %s134
      %p138 = pneg %p132
      %p139 = scmp.eq.s32.totalorder %s15, 1
      %p140 = por %p138, %p139
      %p141 = scmp.ne.s32.totalorder %s133, %s136
      %p142 = scmp.eq.s32.totalorder %s15, 0
      %p143 = por %p141, %p142
      %p144 = scmp.ne.s32.totalorder %s133, %s136
      %p145 = scmp.eq.s32.totalorder %s20, 1
      %p146 = por %p144, %p145
      %p147 = scmp.ne.s32.totalorder %s136, %s137
      %p148 = scmp.eq.s32.totalorder %s20, 0
      %p149 = por %p147, %p148
      %p150 = scmp.ne.s32.totalorder %s136, %s137
      %p151 = scmp.eq.s32.totalorder %s21, 1
      %p152 = por %p150, %p151
      %p154 = scmp.ne.s32.totalorder %s137, %s153
      %p155 = scmp.eq.s32.totalorder %s21, 0
      %p156 = por %p154, %p155
      %s157 = ssub.s32 %s22, %s34
      %p158 = scmp.eq.s32.totalorder %s157, 0
      %s160 = sadd.s32 %s159, 1
      %s161 = scalar_select %p158, %s159, %s160
      %p164 = pneg %p158
      %p165 = scmp.eq.s32.totalorder %s15, 1
      %p166 = por %p164, %p165
      %p167 = scmp.ne.s32.totalorder %s159, %s162
      %p168 = scmp.eq.s32.totalorder %s15, 0
      %p169 = por %p167, %p168
      %p170 = scmp.ne.s32.totalorder %s159, %s162
      %p171 = scmp.eq.s32.totalorder %s20, 1
      %p172 = por %p170, %p171
      %p173 = scmp.ne.s32.totalorder %s162, %s163
      %p174 = scmp.eq.s32.totalorder %s20, 0
      %p175 = por %p173, %p174
      %p176 = scmp.ne.s32.totalorder %s162, %s163
      %p177 = scmp.eq.s32.totalorder %s21, 1
      %p178 = por %p176, %p177
      %p180 = scmp.ne.s32.totalorder %s163, %s179
      %p181 = scmp.eq.s32.totalorder %s21, 0
      %p182 = por %p180, %p181
      %p183 = scmp.le.s32.totalorder 1, %s15
      %p184 = scmp.lt.s32.totalorder %s15, 3
      %p185 = pnand %p183, %p184
      %p186 = pneg %p185
      // Predicated region
      $region9: #{tpu_custom_call.1} parent=5 // pred_check
        _
      $region10: #{tpu_custom_call.1} parent=5 // pred_check_branch
        %188 = sbr.rel (%p185) target = $region12
      $region11: #{tpu_custom_call.1} parent=5 // pred_region
        %s189 = ssub.s32 %s15, 1
        // Predicated region
        $region13: #{tpu_custom_call.1} parent=11 // pred_check
          %p190 = pneg %p76
        $region14: #{tpu_custom_call.1} parent=11 // pred_check_branch
          %192 = sbr.rel (%p190) target = $region16
        $region15: #{tpu_custom_call.1} parent=11 // pred_region
          _
        $region16: #{tpu_custom_call.1} parent=11 // pred_fallthru
          _
        // Predicated region
        $region17: #{tpu_custom_call.1} parent=11 // pred_check
          %p193 = pneg %p97
        $region18: #{tpu_custom_call.1} parent=11 // pred_check_branch
          %195 = sbr.rel (%p193) target = $region20
        $region19: #{tpu_custom_call.1} parent=11 // pred_region
          _
        $region20: #{tpu_custom_call.1} parent=11 // pred_fallthru
          _
      $region12: #{tpu_custom_call.1} parent=5 // pred_fallthru
        _
      %p196 = scmp.lt.s32.totalorder %s15, 2
      // Predicated region
      $region21: #{tpu_custom_call.1} parent=5 // pred_check
        %p197 = pneg %p196
      $region22: #{tpu_custom_call.1} parent=5 // pred_check_branch
        %199 = sbr.rel (%p197) target = $region24
      $region23: #{tpu_custom_call.1} parent=5 // pred_region
        // Predicated region
        $region25: #{tpu_custom_call.1} parent=23 // pred_check
          %p200 = pneg %p49
        $region26: #{tpu_custom_call.1} parent=23 // pred_check_branch
          %202 = sbr.rel (%p200) target = $region28
        $region27: #{tpu_custom_call.1} parent=23 // pred_region
          %s203 = sand.u32 %s39, 1
          %s204 = scalar_lea.sflag [#allocation3], %s203
          %s205 = sand.u32 %s39, 1
          %s206 = smul.addr %s205, 8
          %s207 = scalar_lea.vmem [#allocation2], %s206
          %s208 = smul.u32 2, %s23
          %s210 = ssub.s32 128, 128
          %211 = vsyncadd %s204, %s210
          %s212 = smul.addr %s22, 2
          %s213 = sadd.s32 %s208, %s212
          %s214 = smul.addr %s213, 64
          %s215 = scalar_lea.hbm %s0, %s214
          %s217 = sshll.u32 %s207, 4
          %s218 = int_to_ptr.vmem [resolvable:$true] %s217
          %220 = dma.hbm_to_vmem [thread:$0]  %s215, 128, %s218, %s204
        $region28: #{tpu_custom_call.1} parent=23 // pred_fallthru
          _
      $region24: #{tpu_custom_call.1} parent=5 // pred_fallthru
        _
      %p221 = scmp.le.s32.totalorder 1, %s15
      %p222 = scmp.lt.s32.totalorder %s15, 3
      %p223 = pnand %p221, %p222
      %p224 = pneg %p223
      // Predicated region
      $region29: #{tpu_custom_call.1} parent=5 // pred_check
        _
      $region30: #{tpu_custom_call.1} parent=5 // pred_check_branch
        %226 = sbr.rel (%p223) target = $region32
      $region31: #{tpu_custom_call.1} parent=5 // pred_region
        %s227 = ssub.s32 %s15, 1
        %s228 = sand.u32 %s42, 1
        %s229 = scalar_lea.sflag [#allocation3], %s228
        %s230 = sand.u32 %s42, 1
        %s231 = smul.addr %s230, 8
        %s232 = scalar_lea.vmem [#allocation2], %s231
        // Predicated region
        $region33: #{tpu_custom_call.1} parent=31 // pred_check
          %p233 = pneg %p55
        $region34: #{tpu_custom_call.1} parent=31 // pred_check_branch
          %235 = sbr.rel (%p233) target = $region36
        $region35: #{tpu_custom_call.1} parent=31 // pred_region
          %236 = dma.done %s229, 128
        $region36: #{tpu_custom_call.1} parent=31 // pred_fallthru
          _
        %s237 = sand.u32 %s42, 1
        %s238 = scalar_lea.sflag [#allocation3], %s237
        %s239 = sand.u32 %s42, 1
        %s240 = smul.addr %s239, 8
        %s241 = scalar_lea.vmem [#allocation2], %s240
        %p242 = pneg %p55
        %p243 = pneg %p52
        %p244 = pneg %p76
        %p245 = pneg %p73
        %p246 = pneg %p97
        %p247 = pneg %p94
        %p248 = pneg %p123
        %p249 = pneg %p120
        %p250 = scmp.lt.s32.totalorder %s24, 1
        %s251 = scalar_select %p250, %s24, 1
        %s252 = smul.addr %s251, 4
        %s253 = scalar_lea.vmem %s3, %s252
        %p254 = pneg %p149
        %p255 = pneg %p146
        %p256 = scmp.lt.s32.totalorder %s24, 1
        %s257 = scalar_select %p256, %s24, 1
        %s258 = smul.addr %s257, 4
        %s259 = scalar_lea.vmem %s4, %s258
        %p260 = pneg %p175
        %p261 = pneg %p172
        %p262 = scmp.lt.s32.totalorder %s24, 1
        %s263 = scalar_select %p262, %s24, 1
        %s264 = smul.addr %s263, 4
        %s265 = scalar_lea.vmem %s5, %s264
        %s266 = smul.u32 2, %s25
        %p267 = scmp.lt.s32.totalorder %s24, 1
        %s268 = scalar_select %p267, %s24, 1
        %s269 = smul.addr %s268, 4
        %s270 = scalar_lea.vmem %s3, %s269
        %p271 = scmp.lt.s32.totalorder %s24, 1
        %s272 = scalar_select %p271, %s24, 1
        %s273 = smul.addr %s272, 4
        %s274 = scalar_lea.vmem %s4, %s273
        %p275 = scmp.lt.s32.totalorder %s24, 1
        %s276 = scalar_select %p275, %s24, 1
        %s277 = smul.addr %s276, 4
        %s278 = scalar_lea.vmem %s5, %s277
        %p279 = scmp.eq.s32.totalorder %s25, 0
        // Predicated region
        $region37: #{tpu_custom_call.1} parent=31 // pred_check
          %p280 = pneg %p279
        $region38: #{tpu_custom_call.1} parent=31 // pred_check_branch
          %282 = sbr.rel (%p280) target = $region40
        $region39: #{tpu_custom_call.1} parent=31 // pred_region
          %vm283 = vcmask 3072
          %284 = vst.msk [vmem:[%s270] sm:$0xf] %vm283, 0.0
          %285 = vst.msk [vmem:[%s274] sm:$0xf] %vm283, 0.0
          %286 = vst.msk [vmem:[%s278] sm:$0xf] %vm283, 0.0
        $region40: #{tpu_custom_call.1} parent=31 // pred_fallthru
          _
        %v287 = vld [vmem:[%s232] sm:$0xff]
        %v288 = vmul.f32 %v287, %v287
        %v289 = vld [vmem:[%s1] sm:$0xf]
        %291 = vset.pattern.permute.xlu0 0
        %292 = vperm.xlu0 %291, %v289
        %v293 = vpop.permute.xlu0 %292
        %v296 = vlaneseq
        %v297 = vshrl.u32 %v296, 7
        %v298 = vsub.s32 0, %v297
        %v299 = vrot.slane %v288, %v298
        %v300 = vlaneseq
        %v301 = vshrl.u32 %v300, 7
        %v302 = vsub.s32 4, %v301
        %v303 = vrot.slane %v288, %v302
        %v306 = vlaneseq
        %v307 = vshrl.u32 %v306, 7
        %v308 = vsub.s32 0, %v307
        %v309 = vrot.slane %v299, %v308
        %v310 = vlaneseq
        %v311 = vshrl.u32 %v310, 7
        %v312 = vsub.s32 0, %v311
        %v313 = vrot.slane %v303, %v312
        %v314 = vmul.f32 %v293, %v309
        %v315 = vmul.f32 %v293, %v313
        %316 = vset.pattern.permute.xlu0 1
        %317 = vperm.xlu0 %316, %v289
        %v318 = vpop.permute.xlu0 %317
        %v320 = vlaneseq
        %v321 = vshrl.u32 %v320, 7
        %v322 = vsub.s32 1, %v321
        %v323 = vrot.slane %v288, %v322
        %v324 = vlaneseq
        %v325 = vshrl.u32 %v324, 7
        %v326 = vsub.s32 5, %v325
        %v327 = vrot.slane %v288, %v326
        %v330 = vlaneseq
        %v331 = vshrl.u32 %v330, 7
        %v332 = vsub.s32 1, %v331
        %v333 = vrot.slane %v323, %v332
        %v334 = vlaneseq
        %v335 = vshrl.u32 %v334, 7
        %v336 = vsub.s32 1, %v335
        %v337 = vrot.slane %v327, %v336
        %v338 = vmul.f32 %v318, %v333
        %v339 = vmul.f32 %v318, %v337
        %v340 = vadd.f32 %v314, %v338
        %v341 = vadd.f32 %v315, %v339
        %342 = vset.pattern.permute.xlu0 2
        %343 = vperm.xlu0 %342, %v289
        %v344 = vpop.permute.xlu0 %343
        %v346 = vlaneseq
        %v347 = vshrl.u32 %v346, 7
        %v348 = vsub.s32 2, %v347
        %v349 = vrot.slane %v288, %v348
        %v350 = vlaneseq
        %v351 = vshrl.u32 %v350, 7
        %v352 = vsub.s32 6, %v351
        %v353 = vrot.slane %v288, %v352
        %v356 = vlaneseq
        %v357 = vshrl.u32 %v356, 7
        %v358 = vsub.s32 2, %v357
        %v359 = vrot.slane %v349, %v358
        %v360 = vlaneseq
        %v361 = vshrl.u32 %v360, 7
        %v362 = vsub.s32 2, %v361
        %v363 = vrot.slane %v353, %v362
        %v364 = vmul.f32 %v344, %v359
        %v365 = vmul.f32 %v344, %v363
        %v366 = vadd.f32 %v340, %v364
        %v367 = vadd.f32 %v341, %v365
        %368 = vset.pattern.permute.xlu0 3
        %369 = vperm.xlu0 %368, %v289
        %v370 = vpop.permute.xlu0 %369
        %v372 = vlaneseq
        %v373 = vshrl.u32 %v372, 7
        %v374 = vsub.s32 3, %v373
        %v375 = vrot.slane %v288, %v374
        %v376 = vlaneseq
        %v377 = vshrl.u32 %v376, 7
        %v378 = vsub.s32 7, %v377
        %v379 = vrot.slane %v288, %v378
        %v382 = vlaneseq
        %v383 = vshrl.u32 %v382, 7
        %v384 = vsub.s32 3, %v383
        %v385 = vrot.slane %v375, %v384
        %v386 = vlaneseq
        %v387 = vshrl.u32 %v386, 7
        %v388 = vsub.s32 3, %v387
        %v389 = vrot.slane %v379, %v388
        %v390 = vmul.f32 %v370, %v385
        %v391 = vmul.f32 %v370, %v389
        %v392 = vadd.f32 %v366, %v390
        %v393 = vadd.f32 %v367, %v391
        %v394 = vld [vmem:[%s2] sm:$0xf]
        %396 = vset.pattern.permute.xlu0 0
        %397 = vperm.xlu0 %396, %v394
        %v398 = vpop.permute.xlu0 %397
        %v400 = vadd.f32 %v392, %v398
        %v401 = vadd.f32 %v393, %v398
        %v402 = vrsqrt.pop %v400
        %v403 = vmul.f32 %v400, %v402
        %vm404 = vcmp.eq.f32.partialorder %v400, inf
        %v405 = vsel %vm404, %v400, %v403
        %vm406 = vcmp.eq.f32.partialorder %v400, 0.0
        %v407 = vand.u32 %v400, 2147483648
        %v408 = vsel %vm406, %v407, %v405
        %v409 = vrsqrt.pop %v401
        %v410 = vmul.f32 %v401, %v409
        %vm411 = vcmp.eq.f32.partialorder %v401, inf
        %v412 = vsel %vm411, %v401, %v410
        %vm413 = vcmp.eq.f32.partialorder %v401, 0.0
        %v414 = vand.u32 %v401, 2147483648
        %v415 = vsel %vm413, %v414, %v412
        %v416 = vrsqrt.pop %v400
        %v417 = vrsqrt.pop %v401
        %v420 = vcombine.low %v416, %v417
        %v422 = vmul.f32 %v287, %v420
        %v423 = vld [vmem:[%s270] sm:$0xf]
        %vm424 = vcmask 1043456
        %v425 = vsel %vm424, %v408, -inf
        %v426 = vsel %vm424, %v415, -inf
        %v427 = vmax.f32 %v425, %v426
        %428 = vmax.xlane.f32.xlu0 %v427
        %v429 = vpop.xlane.xlu0 %428
        %v430 = vmax.f32 %v423, %v429
        %vm431 = vcmask 3072
        %432 = vst.msk [vmem:[%s270] sm:$0xf] %vm431, %v430
        %v433 = vld [vmem:[%s274] sm:$0xf]
        %v435 = vcombine.high %v422, %v422
        %v437 = vsel %vm424, %v422, 0.0
        %v438 = vsel %vm424, %v435, 0.0
        %v439 = vadd.f32 %v437, %v438
        %440 = vadd.xlane.f32.xlu0 %v439
        %v441 = vpop.xlane.xlu0 %440
        %v442 = vadd.f32 %v433, %v441
        %443 = vst.msk [vmem:[%s274] sm:$0xf] %vm431, %v442
        %v444 = vld [vmem:[%s278] sm:$0xf]
        %v446 = vcombine.high %v287, %v287
        %v448 = vsel %vm424, %v287, 0.0
        %v449 = vsel %vm424, %v446, 0.0
        %v450 = vadd.f32 %v448, %v449
        %451 = vadd.xlane.f32.xlu0 %v450
        %v452 = vpop.xlane.xlu0 %451
        %v453 = vadd.f32 %v444, %v452
        %454 = vst.msk [vmem:[%s278] sm:$0xf] %vm431, %v453
        %p455 = scmp.lt.s32.totalorder %s24, 1
        %s456 = scalar_select %p455, %s24, 1
        %s457 = smul.addr %s456, 4
        %s458 = scalar_lea.vmem %s3, %s457
        %p459 = scmp.lt.s32.totalorder %s24, 1
        %s460 = scalar_select %p459, %s24, 1
        %s461 = smul.addr %s460, 4
        %s462 = scalar_lea.vmem %s4, %s461
        %p463 = scmp.lt.s32.totalorder %s24, 1
        %s464 = scalar_select %p463, %s24, 1
        %s465 = smul.addr %s464, 4
        %s466 = scalar_lea.vmem %s5, %s465
        // Predicated region
        $region41: #{tpu_custom_call.1} parent=31 // pred_check
          %p467 = pneg %p120
        $region42: #{tpu_custom_call.1} parent=31 // pred_check_branch
          %469 = sbr.rel (%p467) target = $region44
        $region43: #{tpu_custom_call.1} parent=31 // pred_region
          _
        $region44: #{tpu_custom_call.1} parent=31 // pred_fallthru
          _
        // Predicated region
        $region45: #{tpu_custom_call.1} parent=31 // pred_check
          %p470 = pneg %p146
        $region46: #{tpu_custom_call.1} parent=31 // pred_check_branch
          %472 = sbr.rel (%p470) target = $region48
        $region47: #{tpu_custom_call.1} parent=31 // pred_region
          _
        $region48: #{tpu_custom_call.1} parent=31 // pred_fallthru
          _
        // Predicated region
        $region49: #{tpu_custom_call.1} parent=31 // pred_check
          %p473 = pneg %p172
        $region50: #{tpu_custom_call.1} parent=31 // pred_check_branch
          %475 = sbr.rel (%p473) target = $region52
        $region51: #{tpu_custom_call.1} parent=31 // pred_region
          _
        $region52: #{tpu_custom_call.1} parent=31 // pred_fallthru
          _
      $region32: #{tpu_custom_call.1} parent=5 // pred_fallthru
        _
      %p476 = scmp.le.s32.totalorder 2, %s15
      // Predicated region
      $region53: #{tpu_custom_call.1} parent=5 // pred_check
        %p477 = pneg %p476
      $region54: #{tpu_custom_call.1} parent=5 // pred_check_branch
        %479 = sbr.rel (%p477) target = $region56
      $region55: #{tpu_custom_call.1} parent=5 // pred_region
        %s480 = ssub.s32 %s15, 2
        // Predicated region
        $region57: #{tpu_custom_call.1} parent=55 // pred_check
          %p481 = pneg %p126
        $region58: #{tpu_custom_call.1} parent=55 // pred_check_branch
          %483 = sbr.rel (%p481) target = $region60
        $region59: #{tpu_custom_call.1} parent=55 // pred_region
          %p484 = scmp.lt.s32.totalorder %s26, 1
          %s485 = scalar_select %p484, %s26, 1
          %s486 = smul.addr %s485, 4
          %s487 = scalar_lea.vmem %s3, %s486
        $region60: #{tpu_custom_call.1} parent=55 // pred_fallthru
          _
        // Predicated region
        $region61: #{tpu_custom_call.1} parent=55 // pred_check
          %p488 = pneg %p152
        $region62: #{tpu_custom_call.1} parent=55 // pred_check_branch
          %490 = sbr.rel (%p488) target = $region64
        $region63: #{tpu_custom_call.1} parent=55 // pred_region
          %p491 = scmp.lt.s32.totalorder %s26, 1
          %s492 = scalar_select %p491, %s26, 1
          %s493 = smul.addr %s492, 4
          %s494 = scalar_lea.vmem %s4, %s493
        $region64: #{tpu_custom_call.1} parent=55 // pred_fallthru
          _
        // Predicated region
        $region65: #{tpu_custom_call.1} parent=55 // pred_check
          %p495 = pneg %p178
        $region66: #{tpu_custom_call.1} parent=55 // pred_check_branch
          %497 = sbr.rel (%p495) target = $region68
        $region67: #{tpu_custom_call.1} parent=55 // pred_region
          %p498 = scmp.lt.s32.totalorder %s26, 1
          %s499 = scalar_select %p498, %s26, 1
          %s500 = smul.addr %s499, 4
          %s501 = scalar_lea.vmem %s5, %s500
        $region68: #{tpu_custom_call.1} parent=55 // pred_fallthru
          _
      $region56: #{tpu_custom_call.1} parent=5 // pred_fallthru
        _
    $region6: #{tpu_custom_call.1} parent=1 // loop_footer
      %s19 = sadd.s32 1, %s15
    $region7: #{tpu_custom_call.1} parent=1 // loop_footer_branch
      %14 = sbr.rel target = $region3
    $region8: #{tpu_custom_call.1} parent=1 // loop_exit
      _
    %502 = vsyncpa [#allocation3], 1
    %s503 = scalar_lea.sflag [#allocation3], 1
    %504 = vsyncpa %s503, 1

</llo_original>
